<compile_context>
chip_gen: v6e
topology: v6e:2x2x1
jax: 0.10.0
libtpu: 0.0.40
codegen_flags: <defaults>
</compile_context>

<pallas_src>
import functools
from typing import NamedTuple, Optional

import jax
import jax.numpy as jnp
from jax.experimental import pallas as pl
from jax.experimental.pallas import tpu as pltpu


def _round_up(x, m):
    return (x + m - 1) // m * m


def _round_down(x, m):
    return (x // m) * m


# ---------------------------------------------------------------------------
# Kernels
# ---------------------------------------------------------------------------

def _epilogue(out, identity, g, be, eps):
    """f32 epilogue: LayerNorm (biased var) -> affine -> +identity -> SiLU."""
    mean = jnp.mean(out, axis=-1, keepdims=True)
    centered = out - mean
    var = jnp.mean(centered * centered, axis=-1, keepdims=True)
    out = centered * jax.lax.rsqrt(var + eps)
    out = out * g + be
    out = out + identity
    # SiLU via tanh: sigmoid(x) = 0.5*tanh(x/2) + 0.5  (single EUP op, no divide).
    return out * (0.5 * jnp.tanh(0.5 * out) + 0.5)


def _resblock_kernel_resident(x_ref, w_ref, b_ref, g_ref, be_ref, o_ref,
                              *, eps, dim_out, split, compute_dtype):
    # x_ref: (tm, dim_in) native dtype; w_ref: (dim_in, w_cols) bf16 (resident).
    x = x_ref[...]
    # bf16 MXU operands, f32 accumulation.  Cast happens in-kernel (no wrapper
    # HBM pass over x).
    acc = jnp.dot(x.astype(compute_dtype), w_ref[...],
                  preferred_element_type=jnp.float32)
    out = acc[:, :dim_out] + b_ref[...]
    if split is None:
        identity = x.astype(jnp.float32)          # exact residual (dim_in == dim_out)
    else:
        identity = acc[:, split:split + dim_out]  # 128-aligned view into fused matmul
    o_ref[...] = _epilogue(out, identity, g_ref[...], be_ref[...],
                           eps).astype(o_ref.dtype)


def _resblock_kernel_ktiled(*refs, eps, dim_out, split, compute_dtype):
    # Weight-streaming path: grid = (row_blocks, k_blocks), "arbitrary" K last.
    if split is None:
        # Extra full-row x input used only for the exact identity residual.
        x_ref, w_ref, b_ref, g_ref, be_ref, xfull_ref, o_ref, acc_ref = refs
    else:
        x_ref, w_ref, b_ref, g_ref, be_ref, o_ref, acc_ref = refs
        xfull_ref = None

    kk = pl.program_id(1)

    @pl.when(kk == 0)
    def _():
        acc_ref[...] = jnp.zeros_like(acc_ref)

    acc_ref[...] += jnp.dot(x_ref[...].astype(compute_dtype), w_ref[...],
                            preferred_element_type=jnp.float32)

    @pl.when(kk == pl.num_programs(1) - 1)
    def _():
        acc = acc_ref[...]
        out = acc[:, :dim_out] + b_ref[...]
        if split is None:
            identity = xfull_ref[...].astype(jnp.float32)
        else:
            identity = acc[:, split:split + dim_out]
        o_ref[...] = _epilogue(out, identity, g_ref[...], be_ref[...],
                               eps).astype(o_ref.dtype)


# ---------------------------------------------------------------------------
# Parameter preparation (hoist weight fusion / cast out of the per-call path)
# ---------------------------------------------------------------------------

class _ResBlockParams(NamedTuple):
    w_cat: jax.Array          # [dim_in, w_cols] compute dtype (bf16)
    b: jax.Array              # [1, dim_out] f32
    gamma: jax.Array          # [1, dim_out] f32
    beta: jax.Array           # [1, dim_out] f32
    split: Optional[int]      # column offset of skip projection; None => identity skip
    dim_in: int
    dim_out: int


def prepare_resblock_params(w_dense, b_dense, gamma, beta, w_skip=None,
                            compute_dtype=jnp.bfloat16):
    """w_dense/w_skip are [dim_in, dim_out] (already transposed vs. PyTorch storage)."""
    dim_in, dim_out = w_dense.shape
    if w_skip is None:
        assert dim_in == dim_out, "identity skip requires dim_in == dim_out"
        w_cat = w_dense.astype(compute_dtype)
        split = None
    else:
        # Fuse [dense | skip] along the output axis (one MXU matmul produces both
        # projections).  Pad the dense half to a 128-lane boundary so the
        # in-kernel split falls on a vreg tile boundary (free view).
        d_pad = _round_up(dim_out, 128)
        wd = w_dense if d_pad == dim_out else jnp.pad(
            w_dense, ((0, 0), (0, d_pad - dim_out)))
        w_cat = jnp.concatenate([wd, w_skip], axis=1).astype(compute_dtype)
        split = d_pad
    if b_dense is None:
        b_dense = jnp.zeros((dim_out,), jnp.float32)
    b = b_dense.reshape(1, dim_out).astype(jnp.float32)
    g = gamma.reshape(1, dim_out).astype(jnp.float32)
    be = beta.reshape(1, dim_out).astype(jnp.float32)
    return _ResBlockParams(w_cat, b, g, be, split, dim_in, dim_out)


# ---------------------------------------------------------------------------
# Forward
# ---------------------------------------------------------------------------

def _vmem_budget_bytes():
    cap = 64 << 20  # conservative fallback = v7x physical VMEM
    try:
        info = pltpu.get_tpu_info()
        cap = int(getattr(info, "vmem_capacity_bytes", cap)) or cap
    except Exception:
        pass
    # ~75% of physical: ~96 MiB on v5e/v6e (128 MiB), ~48 MiB on v7x (64 MiB).
    return max(32 << 20, (cap * 3) // 4)


def resblock_apply(x, params: _ResBlockParams, *, eps=1e-5,
                   compute_dtype=jnp.bfloat16, max_tm=2048,
                   max_resident_weight_bytes=None, interpret=False):
    orig_shape = x.shape
    dim_in, dim_out = params.dim_in, params.dim_out
    assert orig_shape[-1] == dim_in
    x2 = x.reshape(-1, dim_in)
    N = x2.shape[0]
    out_dtype = x.dtype

    w_cat, split = params.w_cat, params.split
    w_cols = w_cat.shape[1]
    xb = jnp.dtype(x2.dtype).itemsize
    ob = jnp.dtype(out_dtype).itemsize
    wb = jnp.dtype(w_cat.dtype).itemsize

    budget = _vmem_budget_bytes()
    if max_resident_weight_bytes is None:
        max_resident_weight_bytes = min(24 << 20, budget // 3)

    resident_w_bytes = dim_in * w_cols * wb          # single-buffered resident copy
    k_tiled = (resident_w_bytes > max_resident_weight_bytes) and (dim_in % 128 == 0)

    # ---- K tile (weight-streaming) -----------------------------------------
    if k_tiled:
        tk = 128
        for cand in (1024, 512, 256):
            if dim_in % cand == 0 and 2 * cand * w_cols * wb <= max_resident_weight_bytes:
                tk = cand
                break
    else:
        tk = dim_in

    # ---- fixed VMEM cost (independent of tm) --------------------------------
    if k_tiled:
        fixed = 2 * tk * w_cols * wb                 # double-buffered weight K tiles
    else:
        fixed = resident_w_bytes                     # single-buffered resident weight
    fixed += 3 * dim_out * 4                         # bias / gamma / beta

    # ---- per-row VMEM cost ---------------------------------------------------
    per_row = 2 * (tk if k_tiled else dim_in) * xb   # double-buffered x tiles
    per_row += 2 * dim_out * ob                      # double-buffered out tiles
    per_row += w_cols * 4                            # f32 accumulator (scratch / temp)
    if k_tiled and split is None:
        per_row += 2 * dim_in * xb                   # full-row x for the residual
    per_row += 6 * dim_out * 4                       # epilogue f32 temporaries (headroom)

    margin = 6 << 20
    avail = max(budget - fixed - margin, 1 << 20)
    tm = min(max_tm, avail // max(per_row, 1))
    tm = min(tm, _round_up(N, 8))                    # never exceed one (padded) pass
    if N >= 16:
        # Keep >= 2 grid steps on the "parallel" row axis (v7x: 2 TensorCores).
        tm = min(tm, _round_up(pl.cdiv(N, 2), 8))
    tm = max(8, _round_down(tm, 8))
    if tm >= 256:
        tm = _round_down(tm, 128)                    # MXU-height friendly
    n_rows = pl.cdiv(N, tm)

    # ---- specs ---------------------------------------------------------------
    const1 = dict(pipeline_mode=pl.Buffered(1))      # single-buffer grid-invariant ops
    if not k_tiled:
        kernel = functools.partial(_resblock_kernel_resident, eps=eps,
                                   dim_out=dim_out, split=split,
                                   compute_dtype=compute_dtype)
        grid = (n_rows,)
        in_specs = [
            pl.BlockSpec((tm, dim_in), lambda i: (i, 0)),
            pl.BlockSpec((dim_in, w_cols), lambda i: (0, 0), **const1),
            pl.BlockSpec((1, dim_out), lambda i: (0, 0), **const1),
            pl.BlockSpec((1, dim_out), lambda i: (0, 0), **const1),
            pl.BlockSpec((1, dim_out), lambda i: (0, 0), **const1),
        ]
        out_specs = pl.BlockSpec((tm, dim_out), lambda i: (i, 0))
        scratch_shapes = []
        dim_sem = ("parallel",)
        args = [x2, w_cat, params.b, params.gamma, params.beta]
    else:
        nk = dim_in // tk
        kernel = functools.partial(_resblock_kernel_ktiled, eps=eps,
                                   dim_out=dim_out, split=split,
                                   compute_dtype=compute_dtype)
        grid = (n_rows, nk)
        in_specs = [
            pl.BlockSpec((tm, tk), lambda i, kk: (i, kk)),
            pl.BlockSpec((tk, w_cols), lambda i, kk: (kk, 0)),
            pl.BlockSpec((1, dim_out), lambda i, kk: (0, 0), **const1),
            pl.BlockSpec((1, dim_out), lambda i, kk: (0, 0), **const1),
            pl.BlockSpec((1, dim_out), lambda i, kk: (0, 0), **const1),
        ]
        args = [x2, w_cat, params.b, params.gamma, params.beta]
        if split is None:
            # Full-row x (constant index across K -> fetched once per row block),
            # used only in the finalize step for the exact f32 residual.
            in_specs.append(pl.BlockSpec((tm, dim_in), lambda i, kk: (i, 0)))
            args.append(x2)
        out_specs = pl.BlockSpec((tm, dim_out), lambda i, kk: (i, 0))
        scratch_shapes = [pltpu.VMEM((tm, w_cols), jnp.float32)]
        dim_sem = ("parallel", "arbitrary")

    cost = pl.CostEstimate(
        flops=int(2 * N * dim_in * w_cols + 12 * N * dim_out),
        transcendentals=int(N * dim_out),
        bytes_accessed=int(N * dim_in * xb + dim_in * w_cols * wb
                           + 3 * dim_out * 4 + N * dim_out * ob),
    )

    out = pl.pallas_call(
        kernel,
        out_shape=jax.ShapeDtypeStruct((N, dim_out), out_dtype),
        grid_spec=pltpu.PrefetchScalarGridSpec(
            num_scalar_prefetch=0,
            grid=grid,
            in_specs=in_specs,
            out_specs=out_specs,
            scratch_shapes=scratch_shapes,
        ),
        compiler_params=pltpu.CompilerParams(
            dimension_semantics=dim_sem,
            vmem_limit_bytes=int(budget)),
        cost_estimate=cost,
        interpret=interpret,
    )(*args)

    return out.reshape(orig_shape[:-1] + (dim_out,))


def resblock_forward(x, w_dense, b_dense, gamma, beta, w_skip=None, **kwargs):
    """x: [..., dim_in] -> [..., dim_out].  In a real model, call
    prepare_resblock_params once and reuse the prepared params across calls."""
    compute_dtype = kwargs.pop("compute_dtype", jnp.bfloat16)
    params = prepare_resblock_params(w_dense, b_dense, gamma, beta, w_skip,
                                     compute_dtype=compute_dtype)
    return resblock_apply(x, params, compute_dtype=compute_dtype, **kwargs)


# ---------------------------------------------------------------------------
# Reference (mirrors the kernel's precision: bf16 matmul operands, f32 math,
# exact f32 identity residual)
# ---------------------------------------------------------------------------

def _reference(x, w_dense, b_dense, gamma, beta, w_skip=None, *, eps=1e-5,
               compute_dtype=jnp.bfloat16):
    xf = x.astype(jnp.float32)
    xc = x.astype(compute_dtype).astype(jnp.float32)
    wd = w_dense.astype(compute_dtype).astype(jnp.float32)
    out = xc @ wd
    if b_dense is not None:
        out = out + b_dense.astype(jnp.float32)
    mean = out.mean(axis=-1, keepdims=True)
    var = ((out - mean) ** 2).mean(axis=-1, keepdims=True)
    out = (out - mean) * jax.lax.rsqrt(var + eps)
    out = out * gamma.astype(jnp.float32) + beta.astype(jnp.float32)
    if w_skip is not None:
        ws = w_skip.astype(compute_dtype).astype(jnp.float32)
        identity = xc @ ws
    else:
        identity = xf
    out = out + identity
    return (out * jax.nn.sigmoid(out)).astype(x.dtype)


if __name__ == "__main__":
    key = jax.random.PRNGKey(0)

    def make_case(ck, N, di, do, skip):
        ks = jax.random.split(ck, 6)
        x = jax.random.normal(ks[0], (N, di), dtype=jnp.float32)
        w = jax.random.normal(ks[1], (di, do), dtype=jnp.float32) * 0.1
        b = jax.random.normal(ks[2], (do,), dtype=jnp.float32) * 0.1
        g = 1.0 + 0.1 * jax.random.normal(ks[3], (do,), dtype=jnp.float32)
        be = 0.1 * jax.random.normal(ks[4], (do,), dtype=jnp.float32)
        ws = (jax.random.normal(ks[5], (di, do), dtype=jnp.float32) * 0.1
              if skip else None)
        return x, w, b, g, be, ws

    cases = [
        # (name, N, dim_in, dim_out, skip Linear?, force K-tiling?)
        ("skip-fused / resident weights",     512, 64, 128, True,  False),
        ("identity skip / partial row block", 300, 128, 128, False, False),
        ("skip-fused / K-tiled weights",      384, 256, 128, True,  True),
        ("identity skip / K-tiled weights",   260, 256, 256, False, True),
    ]

    keys = jax.random.split(key, len(cases))
    for ck, (name, N, di, do, skip, force_kt) in zip(keys, cases):
        x, w, b, g, be, ws = make_case(ck, N, di, do, skip)
        extra = dict(max_resident_weight_bytes=1) if force_kt else {}
        out = jax.block_until_ready(resblock_forward(x, w, b, g, be, ws, **extra))
        ref = _reference(x, w, b, g, be, ws)
        assert out.shape == (N, do), f"shape mismatch: {name}"
        assert bool(jnp.allclose(out, ref, atol=5e-3, rtol=5e-3)), f"mismatch: {name}"

    print("KERNEL_OK")
</pallas_src>

<mosaic_0001>
module attributes {stable_mosaic.version = 11 : i64} {
  func.func @_resblock_kernel_resident(%arg0: i32, %arg1: memref<256x64xf32, #tpu.memory_space<vmem>>, %arg2: memref<64x256xbf16, #tpu.memory_space<vmem>>, %arg3: memref<1x128xf32, #tpu.memory_space<vmem>>, %arg4: memref<1x128xf32, #tpu.memory_space<vmem>>, %arg5: memref<1x128xf32, #tpu.memory_space<vmem>>, %arg6: memref<256x128xf32, #tpu.memory_space<vmem>>) attributes {dimension_semantics = [#tpu.dimension_semantics<parallel>], iteration_bounds = array<i64: 2>, scalar_prefetch = 0 : i64, scratch_operands = 0 : i64, tpu.core_type = #tpu.core_type<tc>, window_params = [{transform_indices = @transform_0, window_bounds = array<i64: 256, 64>}, {pipeline_mode = #tpu.pipeline_mode<synchronous>, transform_indices = @transform_1, window_bounds = array<i64: 64, 256>}, {pipeline_mode = #tpu.pipeline_mode<synchronous>, transform_indices = @transform_2, window_bounds = array<i64: 1, 128>}, {pipeline_mode = #tpu.pipeline_mode<synchronous>, transform_indices = @transform_3, window_bounds = array<i64: 1, 128>}, {pipeline_mode = #tpu.pipeline_mode<synchronous>, transform_indices = @transform_4, window_bounds = array<i64: 1, 128>}, {transform_indices = @transform_5, window_bounds = array<i64: 256, 128>}]} {
    %c0 = arith.constant 0 : index
    %c0_0 = arith.constant 0 : index
    %0 = vector.load %arg1[%c0, %c0_0] : memref<256x64xf32, #tpu.memory_space<vmem>>, vector<256x64xf32>
    %1 = arith.truncf %0 : vector<256x64xf32> to vector<256x64xbf16>
    %c0_1 = arith.constant 0 : index
    %c0_2 = arith.constant 0 : index
    %2 = vector.load %arg2[%c0_1, %c0_2] : memref<64x256xbf16, #tpu.memory_space<vmem>>, vector<64x256xbf16>
    %cst = arith.constant dense<0.000000e+00> : vector<256x256xf32>
    %3 = tpu.matmul %1, %2, %cst {dimension_numbers = #tpu.dot_dimension_numbers<[1], [0], [0], [1], [0, 0, 1, 1], [], []>} : vector<256x64xbf16>, vector<64x256xbf16>, vector<256x256xf32> -> vector<256x256xf32>
    %4 = vector.extract_strided_slice %3 {offsets = [0, 0], sizes = [256, 128], strides = [1, 1]} : vector<256x256xf32> to vector<256x128xf32>
    %c0_3 = arith.constant 0 : index
    %c0_4 = arith.constant 0 : index
    %5 = vector.load %arg3[%c0_3, %c0_4] : memref<1x128xf32, #tpu.memory_space<vmem>>, vector<1x128xf32>
    %6 = vector.broadcast %5 : vector<1x128xf32> to vector<256x128xf32>
    %7 = arith.addf %4, %6 : vector<256x128xf32>
    %8 = vector.extract_strided_slice %3 {offsets = [0, 128], sizes = [256, 128], strides = [1, 1]} : vector<256x256xf32> to vector<256x128xf32>
    %c0_5 = arith.constant 0 : index
    %c0_6 = arith.constant 0 : index
    %9 = vector.load %arg4[%c0_5, %c0_6] : memref<1x128xf32, #tpu.memory_space<vmem>>, vector<1x128xf32>
    %c0_7 = arith.constant 0 : index
    %c0_8 = arith.constant 0 : index
    %10 = vector.load %arg5[%c0_7, %c0_8] : memref<1x128xf32, #tpu.memory_space<vmem>>, vector<1x128xf32>
    %cst_9 = arith.constant dense<0.000000e+00> : vector<256xf32>
    %11 = vector.multi_reduction <add>, %7, %cst_9 [1] : vector<256x128xf32> to vector<256xf32>
    %12 = vector.shape_cast %11 : vector<256xf32> to vector<256x1xf32>
    %cst_10 = arith.constant 1.280000e+02 : f32
    %13 = vector.broadcast %cst_10 : f32 to vector<256x1xf32>
    %14 = arith.divf %12, %13 : vector<256x1xf32>
    %15 = vector.broadcast %14 : vector<256x1xf32> to vector<256x128xf32>
    %16 = arith.subf %7, %15 : vector<256x128xf32>
    %17 = arith.mulf %16, %16 : vector<256x128xf32>
    %cst_11 = arith.constant dense<0.000000e+00> : vector<256xf32>
    %18 = vector.multi_reduction <add>, %17, %cst_11 [1] : vector<256x128xf32> to vector<256xf32>
    %19 = vector.shape_cast %18 : vector<256xf32> to vector<256x1xf32>
    %cst_12 = arith.constant 1.280000e+02 : f32
    %20 = vector.broadcast %cst_12 : f32 to vector<256x1xf32>
    %21 = arith.divf %19, %20 : vector<256x1xf32>
    %cst_13 = arith.constant 9.99999974E-6 : f32
    %22 = vector.broadcast %cst_13 : f32 to vector<256x1xf32>
    %23 = arith.addf %21, %22 : vector<256x1xf32>
    %24 = math.rsqrt %23 : vector<256x1xf32>
    %25 = vector.broadcast %24 : vector<256x1xf32> to vector<256x128xf32>
    %26 = arith.mulf %16, %25 : vector<256x128xf32>
    %27 = vector.broadcast %9 : vector<1x128xf32> to vector<256x128xf32>
    %28 = arith.mulf %26, %27 : vector<256x128xf32>
    %29 = vector.broadcast %10 : vector<1x128xf32> to vector<256x128xf32>
    %30 = arith.addf %28, %29 : vector<256x128xf32>
    %31 = arith.addf %30, %8 : vector<256x128xf32>
    %cst_14 = arith.constant 5.000000e-01 : f32
    %32 = vector.broadcast %cst_14 : f32 to vector<256x128xf32>
    %33 = arith.mulf %32, %31 : vector<256x128xf32>
    %34 = math.tanh %33 : vector<256x128xf32>
    %cst_15 = arith.constant 5.000000e-01 : f32
    %35 = vector.broadcast %cst_15 : f32 to vector<256x128xf32>
    %36 = arith.mulf %35, %34 : vector<256x128xf32>
    %cst_16 = arith.constant 5.000000e-01 : f32
    %37 = vector.broadcast %cst_16 : f32 to vector<256x128xf32>
    %38 = arith.addf %36, %37 : vector<256x128xf32>
    %39 = arith.mulf %31, %38 : vector<256x128xf32>
    %c0_17 = arith.constant 0 : index
    %c0_18 = arith.constant 0 : index
    %40 = vector.load %arg6[%c0_17, %c0_18] : memref<256x128xf32, #tpu.memory_space<vmem>>, vector<256x128xf32>
    tpu.vector_store %arg6[%c0_17, %c0_18], %39 {strides = array<i32>} : memref<256x128xf32, #tpu.memory_space<vmem>>, vector<256x128xf32>,
    return
  }
  func.func @transform_0(%arg0: i32) -> (i32, i32) {
    %c0_i32 = arith.constant 0 : i32
    %c0_i32_0 = arith.constant 0 : i32
    return %arg0, %c0_i32 : i32, i32
  }
  func.func @transform_1(%arg0: i32) -> (i32, i32) {
    %c0_i32 = arith.constant 0 : i32
    %c0_i32_0 = arith.constant 0 : i32
    %c0_i32_1 = arith.constant 0 : i32
    return %c0_i32, %c0_i32_0 : i32, i32
  }
  func.func @transform_2(%arg0: i32) -> (i32, i32) {
    %c0_i32 = arith.constant 0 : i32
    %c0_i32_0 = arith.constant 0 : i32
    %c0_i32_1 = arith.constant 0 : i32
    return %c0_i32, %c0_i32_0 : i32, i32
  }
  func.func @transform_3(%arg0: i32) -> (i32, i32) {
    %c0_i32 = arith.constant 0 : i32
    %c0_i32_0 = arith.constant 0 : i32
    %c0_i32_1 = arith.constant 0 : i32
    return %c0_i32, %c0_i32_0 : i32, i32
  }
  func.func @transform_4(%arg0: i32) -> (i32, i32) {
    %c0_i32 = arith.constant 0 : i32
    %c0_i32_0 = arith.constant 0 : i32
    %c0_i32_1 = arith.constant 0 : i32
    return %c0_i32, %c0_i32_0 : i32, i32
  }
  func.func @transform_5(%arg0: i32) -> (i32, i32) {
    %c0_i32 = arith.constant 0 : i32
    %c0_i32_0 = arith.constant 0 : i32
    return %arg0, %c0_i32 : i32, i32
  }
}

</mosaic_0001>

<llo_original>
// kernel: tpu_custom_call.1
$region0: #{tpu_custom_call.1}
  #allocation0 [shape = 'u32[]', space=smem, size = 0x4, offset = 0x4, fixed_abs, tag = 'smem constant byte address 0x4 - core index']
  #allocation1 [shape = 'u32[144,128]{1,0:T(1,128)}', space=vmem, size = 0x12000, scoped, tag = 'internal scratch']
  %s0 = inlined_call_operand.vmem [shape: f32[512,64], index: 0, kind: input, shape index: {}]
  %s1 = inlined_call_operand.vmem [shape: bf16[64,256], index: 1, kind: input, shape index: {}]
  %s2 = inlined_call_operand.vmem [shape: f32[1,128], index: 2, kind: input, shape index: {}]
  %s3 = inlined_call_operand.vmem [shape: f32[1,128], index: 3, kind: input, shape index: {}]
  %s4 = inlined_call_operand.vmem [shape: f32[1,128], index: 4, kind: input, shape index: {}]
  %s5 = inlined_call_operand.hbm [shape: f32[512,128], index: 5, kind: output, shape index: {}]
  %s6 = sld [smem:[#allocation0]]
  $region53: #{tpu_custom_call.1} parent=0
    _
  %s8 = ssub.s32 1, %s6
  %s9 = scalar_select 0, %s8, %s6
  $region1: #{tpu_custom_call.1} parent=0
    #allocation2 [shape = 'u8[262144]{0}', space=vmem, size = 0x40000, scoped, tag = 'output window, operand 0']
    #allocation3 [shape = 's32[2]{0}', space=sflag, size = 0x8, scoped, tag = 'scoped memory for tpu_custom_call.1']
    %10 = vsyncpa [#allocation3], 0
    %s11 = scalar_lea.sflag [#allocation3], 1
    %12 = vsyncpa %s11, 0
    loop: start=0, step=1, limit=4
    $region2: #{tpu_custom_call.1} parent=1 // loop_pre_header
      _
    $region3: #{tpu_custom_call.1} parent=1 // loop_header
      %s14 = sphi 0, %s18
      %p15 = scmp.ge.s32.totalorder %s14, 4
      %s24 = sphi 0, %s26
      %s27 = sphi 0, %s24
      %s28 = sphi 0, %s27
      %s44 = sphi 0, %s28
      %s48 = sphi 0, %s48
      %s50 = sphi 0, %s48
      %s51 = sphi 0, %s50
      %s65 = sphi 0, %s51
      %s69 = sphi 0, %s69
      %s71 = sphi 0, %s69
      %s72 = sphi 0, %s71
      %s86 = sphi 0, %s72
      %s90 = sphi 0, %s90
      %s92 = sphi 0, %s90
      %s93 = sphi 0, %s92
      %s107 = sphi 0, %s93
      %s111 = sphi 0, %s111
      %s113 = sphi 0, %s111
      %s114 = sphi 0, %s113
      %s128 = sphi 0, %s114
      %s134 = sphi 0, %s136
      %s137 = sphi 0, %s134
      %s138 = sphi 0, %s137
      %s154 = sphi 0, %s138
    $region4: #{tpu_custom_call.1} parent=1 // loop_header_branch
      %17 = sbr.rel (%p15) target = $region8
    $region5: #{tpu_custom_call.1} parent=1 // loop_body
      %s19 = ssub.s32 %s14, 1
      %s20 = ssub.s32 %s14, 2
      %s21 = sadd.s32 %s14, 1
      %s22 = ssub.s32 %s14, %s21
      %p23 = scmp.eq.s32.totalorder %s22, 0
      %s25 = sadd.s32 %s24, 1
      %s26 = scalar_select %p23, %s24, %s25
      %p29 = pneg %p23
      %p30 = scmp.eq.s32.totalorder %s14, 1
      %p31 = por %p29, %p30
      %p32 = scmp.ne.s32.totalorder %s24, %s27
      %p33 = scmp.eq.s32.totalorder %s14, 0
      %p34 = por %p32, %p33
      %p35 = scmp.ne.s32.totalorder %s24, %s27
      %p36 = scmp.eq.s32.totalorder %s19, 1
      %p37 = por %p35, %p36
      %p38 = scmp.ne.s32.totalorder %s27, %s28
      %p39 = scmp.eq.s32.totalorder %s19, 0
      %p40 = por %p38, %p39
      %p41 = scmp.ne.s32.totalorder %s27, %s28
      %p42 = scmp.eq.s32.totalorder %s20, 1
      %p43 = por %p41, %p42
      %p45 = scmp.ne.s32.totalorder %s28, %s44
      %p46 = scmp.eq.s32.totalorder %s20, 0
      %p47 = por %p45, %p46
      %s49 = sadd.s32 %s48, 1
      %p52 = scmp.eq.s32.totalorder %s14, 1
      %p53 = scmp.ne.s32.totalorder %s48, %s50
      %p54 = scmp.eq.s32.totalorder %s14, 0
      %p55 = por %p53, %p54
      %p56 = scmp.ne.s32.totalorder %s48, %s50
      %p57 = scmp.eq.s32.totalorder %s19, 1
      %p58 = por %p56, %p57
      %p59 = scmp.ne.s32.totalorder %s50, %s51
      %p60 = scmp.eq.s32.totalorder %s19, 0
      %p61 = por %p59, %p60
      %p62 = scmp.ne.s32.totalorder %s50, %s51
      %p63 = scmp.eq.s32.totalorder %s20, 1
      %p64 = por %p62, %p63
      %p66 = scmp.ne.s32.totalorder %s51, %s65
      %p67 = scmp.eq.s32.totalorder %s20, 0
      %p68 = por %p66, %p67
      %s70 = sadd.s32 %s69, 1
      %p73 = scmp.eq.s32.totalorder %s14, 1
      %p74 = scmp.ne.s32.totalorder %s69, %s71
      %p75 = scmp.eq.s32.totalorder %s14, 0
      %p76 = por %p74, %p75
      %p77 = scmp.ne.s32.totalorder %s69, %s71
      %p78 = scmp.eq.s32.totalorder %s19, 1
      %p79 = por %p77, %p78
      %p80 = scmp.ne.s32.totalorder %s71, %s72
      %p81 = scmp.eq.s32.totalorder %s19, 0
      %p82 = por %p80, %p81
      %p83 = scmp.ne.s32.totalorder %s71, %s72
      %p84 = scmp.eq.s32.totalorder %s20, 1
      %p85 = por %p83, %p84
      %p87 = scmp.ne.s32.totalorder %s72, %s86
      %p88 = scmp.eq.s32.totalorder %s20, 0
      %p89 = por %p87, %p88
      %s91 = sadd.s32 %s90, 1
      %p94 = scmp.eq.s32.totalorder %s14, 1
      %p95 = scmp.ne.s32.totalorder %s90, %s92
      %p96 = scmp.eq.s32.totalorder %s14, 0
      %p97 = por %p95, %p96
      %p98 = scmp.ne.s32.totalorder %s90, %s92
      %p99 = scmp.eq.s32.totalorder %s19, 1
      %p100 = por %p98, %p99
      %p101 = scmp.ne.s32.totalorder %s92, %s93
      %p102 = scmp.eq.s32.totalorder %s19, 0
      %p103 = por %p101, %p102
      %p104 = scmp.ne.s32.totalorder %s92, %s93
      %p105 = scmp.eq.s32.totalorder %s20, 1
      %p106 = por %p104, %p105
      %p108 = scmp.ne.s32.totalorder %s93, %s107
      %p109 = scmp.eq.s32.totalorder %s20, 0
      %p110 = por %p108, %p109
      %s112 = sadd.s32 %s111, 1
      %p115 = scmp.eq.s32.totalorder %s14, 1
      %p116 = scmp.ne.s32.totalorder %s111, %s113
      %p117 = scmp.eq.s32.totalorder %s14, 0
      %p118 = por %p116, %p117
      %p119 = scmp.ne.s32.totalorder %s111, %s113
      %p120 = scmp.eq.s32.totalorder %s19, 1
      %p121 = por %p119, %p120
      %p122 = scmp.ne.s32.totalorder %s113, %s114
      %p123 = scmp.eq.s32.totalorder %s19, 0
      %p124 = por %p122, %p123
      %p125 = scmp.ne.s32.totalorder %s113, %s114
      %p126 = scmp.eq.s32.totalorder %s20, 1
      %p127 = por %p125, %p126
      %p129 = scmp.ne.s32.totalorder %s114, %s128
      %p130 = scmp.eq.s32.totalorder %s20, 0
      %p131 = por %p129, %p130
      %s132 = ssub.s32 %s14, %s21
      %p133 = scmp.eq.s32.totalorder %s132, 0
      %s135 = sadd.s32 %s134, 1
      %s136 = scalar_select %p133, %s134, %s135
      %p139 = pneg %p133
      %p140 = scmp.eq.s32.totalorder %s14, 1
      %p141 = por %p139, %p140
      %p142 = scmp.ne.s32.totalorder %s134, %s137
      %p143 = scmp.eq.s32.totalorder %s14, 0
      %p144 = por %p142, %p143
      %p145 = scmp.ne.s32.totalorder %s134, %s137
      %p146 = scmp.eq.s32.totalorder %s19, 1
      %p147 = por %p145, %p146
      %p148 = scmp.ne.s32.totalorder %s137, %s138
      %p149 = scmp.eq.s32.totalorder %s19, 0
      %p150 = por %p148, %p149
      %p151 = scmp.ne.s32.totalorder %s137, %s138
      %p152 = scmp.eq.s32.totalorder %s20, 1
      %p153 = por %p151, %p152
      %p155 = scmp.ne.s32.totalorder %s138, %s154
      %p156 = scmp.eq.s32.totalorder %s20, 0
      %p157 = por %p155, %p156
      %p158 = scmp.le.s32.totalorder 1, %s14
      %p159 = scmp.lt.s32.totalorder %s14, 3
      %p160 = pnand %p158, %p159
      %p161 = pneg %p160
      // Predicated region
      $region9: #{tpu_custom_call.1} parent=5 // pred_check
        _
      $region10: #{tpu_custom_call.1} parent=5 // pred_check_branch
        %163 = sbr.rel (%p160) target = $region12
      $region11: #{tpu_custom_call.1} parent=5 // pred_region
        %s164 = ssub.s32 %s14, 1
        // Predicated region
        $region13: #{tpu_custom_call.1} parent=11 // pred_check
          %p165 = pneg %p61
        $region14: #{tpu_custom_call.1} parent=11 // pred_check_branch
          %167 = sbr.rel (%p165) target = $region16
        $region15: #{tpu_custom_call.1} parent=11 // pred_region
          _
        $region16: #{tpu_custom_call.1} parent=11 // pred_fallthru
          _
        // Predicated region
        $region17: #{tpu_custom_call.1} parent=11 // pred_check
          %p168 = pneg %p82
        $region18: #{tpu_custom_call.1} parent=11 // pred_check_branch
          %170 = sbr.rel (%p168) target = $region20
        $region19: #{tpu_custom_call.1} parent=11 // pred_region
          _
        $region20: #{tpu_custom_call.1} parent=11 // pred_fallthru
          _
        // Predicated region
        $region21: #{tpu_custom_call.1} parent=11 // pred_check
          %p171 = pneg %p103
        $region22: #{tpu_custom_call.1} parent=11 // pred_check_branch
          %173 = sbr.rel (%p171) target = $region24
        $region23: #{tpu_custom_call.1} parent=11 // pred_region
          _
        $region24: #{tpu_custom_call.1} parent=11 // pred_fallthru
          _
        // Predicated region
        $region25: #{tpu_custom_call.1} parent=11 // pred_check
          %p174 = pneg %p124
        $region26: #{tpu_custom_call.1} parent=11 // pred_check_branch
          %176 = sbr.rel (%p174) target = $region28
        $region27: #{tpu_custom_call.1} parent=11 // pred_region
          _
        $region28: #{tpu_custom_call.1} parent=11 // pred_fallthru
          _
      $region12: #{tpu_custom_call.1} parent=5 // pred_fallthru
        _
      %p177 = scmp.lt.s32.totalorder %s14, 2
      // Predicated region
      $region29: #{tpu_custom_call.1} parent=5 // pred_check
        %p178 = pneg %p177
      $region30: #{tpu_custom_call.1} parent=5 // pred_check_branch
        %180 = sbr.rel (%p178) target = $region32
      $region31: #{tpu_custom_call.1} parent=5 // pred_region
        // Predicated region
        $region33: #{tpu_custom_call.1} parent=31 // pred_check
          %p181 = pneg %p34
        $region34: #{tpu_custom_call.1} parent=31 // pred_check_branch
          %183 = sbr.rel (%p181) target = $region36
        $region35: #{tpu_custom_call.1} parent=31 // pred_region
          %s184 = smul.u32 32, %s14
          %p185 = scmp.lt.s32.totalorder %s184, 63
          %s186 = scalar_select %p185, %s184, 63
          %s187 = smul.addr %s186, 8
          %s188 = scalar_lea.vmem %s0, %s187
          %s189 = smul.u32 32, %s14
        $region36: #{tpu_custom_call.1} parent=31 // pred_fallthru
          _
      $region32: #{tpu_custom_call.1} parent=5 // pred_fallthru
        _
      %p190 = scmp.le.s32.totalorder 1, %s14
      %p191 = scmp.lt.s32.totalorder %s14, 3
      %p192 = pnand %p190, %p191
      %p193 = pneg %p192
      // Predicated region
      $region37: #{tpu_custom_call.1} parent=5 // pred_check
        _
      $region38: #{tpu_custom_call.1} parent=5 // pred_check_branch
        %195 = sbr.rel (%p192) target = $region40
      $region39: #{tpu_custom_call.1} parent=5 // pred_region
        %s196 = ssub.s32 %s14, 1
        %s197 = smul.u32 32, %s19
        %p198 = scmp.lt.s32.totalorder %s197, 63
        %s199 = scalar_select %p198, %s197, 63
        %s200 = smul.addr %s199, 8
        %s201 = scalar_lea.vmem %s0, %s200
        %p202 = pneg %p40
        %p203 = pneg %p37
        %p204 = pneg %p61
        %p205 = pneg %p58
        %p206 = pneg %p82
        %p207 = pneg %p79
        %p208 = pneg %p103
        %p209 = pneg %p100
        %p210 = pneg %p124
        %p211 = pneg %p121
        %p212 = pneg %p150
        %p213 = pneg %p147
        %s214 = sand.u32 %s137, 1
        %s215 = scalar_lea.sflag [#allocation3], %s214
        %s216 = sand.u32 %s137, 1
        %s217 = smul.addr %s216, 256
        %s218 = scalar_lea.vmem [#allocation2], %s217
        %s219 = smul.u32 32, %s19
        %p220 = scmp.lt.s32.totalorder %s219, 63
        %s221 = scalar_select %p220, %s219, 63
        %s222 = smul.addr %s221, 8
        %s223 = scalar_lea.vmem %s0, %s222
        %s224 = smul.u32 32, %s19
        %s225 = smul.u32 32, %s19
        %v227 = vld [vmem:[%s223] sm:$0xff]
        %v228 = vld [vmem:[%s223 + $0x8] sm:$0xff]
        %v229 = vld [vmem:[%s223 + $0x10] sm:$0xff]
        %v230 = vld [vmem:[%s223 + $0x18] sm:$0xff]
        %v231 = vld [vmem:[%s223 + $0x20] sm:$0xff]
        %v232 = vld [vmem:[%s223 + $0x28] sm:$0xff]
        %v233 = vld [vmem:[%s223 + $0x30] sm:$0xff]
        %v234 = vld [vmem:[%s223 + $0x38] sm:$0xff]
        %v235 = vld [vmem:[%s223 + $0x40] sm:$0xff]
        %v236 = vld [vmem:[%s223 + $0x48] sm:$0xff]
        %v237 = vld [vmem:[%s223 + $0x50] sm:$0xff]
        %v238 = vld [vmem:[%s223 + $0x58] sm:$0xff]
        %v239 = vld [vmem:[%s223 + $0x60] sm:$0xff]
        %v240 = vld [vmem:[%s223 + $0x68] sm:$0xff]
        %v241 = vld [vmem:[%s223 + $0x70] sm:$0xff]
        %v242 = vld [vmem:[%s223 + $0x78] sm:$0xff]
        %v243 = vld [vmem:[%s223 + $0x80] sm:$0xff]
        %v244 = vld [vmem:[%s223 + $0x88] sm:$0xff]
        %v245 = vld [vmem:[%s223 + $0x90] sm:$0xff]
        %v246 = vld [vmem:[%s223 + $0x98] sm:$0xff]
        %v247 = vld [vmem:[%s223 + $0xa0] sm:$0xff]
        %v248 = vld [vmem:[%s223 + $0xa8] sm:$0xff]
        %v249 = vld [vmem:[%s223 + $0xb0] sm:$0xff]
        %v250 = vld [vmem:[%s223 + $0xb8] sm:$0xff]
        %v251 = vld [vmem:[%s223 + $0xc0] sm:$0xff]
        %v252 = vld [vmem:[%s223 + $0xc8] sm:$0xff]
        %v253 = vld [vmem:[%s223 + $0xd0] sm:$0xff]
        %v254 = vld [vmem:[%s223 + $0xd8] sm:$0xff]
        %v255 = vld [vmem:[%s223 + $0xe0] sm:$0xff]
        %v256 = vld [vmem:[%s223 + $0xe8] sm:$0xff]
        %v257 = vld [vmem:[%s223 + $0xf0] sm:$0xff]
        %v258 = vld [vmem:[%s223 + $0xf8] sm:$0xff]
        %v259 = vpack.c.bf16 %v228, %v227
        %v260 = vpack.c.bf16 %v230, %v229
        %v261 = vpack.c.bf16 %v232, %v231
        %v262 = vpack.c.bf16 %v234, %v233
        %v263 = vpack.c.bf16 %v236, %v235
        %v264 = vpack.c.bf16 %v238, %v237
        %v265 = vpack.c.bf16 %v240, %v239
        %v266 = vpack.c.bf16 %v242, %v241
        %v267 = vpack.c.bf16 %v244, %v243
        %v268 = vpack.c.bf16 %v246, %v245
        %v269 = vpack.c.bf16 %v248, %v247
        %v270 = vpack.c.bf16 %v250, %v249
        %v271 = vpack.c.bf16 %v252, %v251
        %v272 = vpack.c.bf16 %v254, %v253
        %v273 = vpack.c.bf16 %v256, %v255
        %v274 = vpack.c.bf16 %v258, %v257
        %v275 = vld [vmem:[%s1] sm:$0xff]
        %v276 = vld [vmem:[%s1 + $0x8] sm:$0xff]
        %v277 = vld [vmem:[%s1 + $0x10] sm:$0xff]
        %v278 = vld [vmem:[%s1 + $0x18] sm:$0xff]
        %v279 = vld [vmem:[%s1 + $0x20] sm:$0xff]
        %v280 = vld [vmem:[%s1 + $0x28] sm:$0xff]
        %v281 = vld [vmem:[%s1 + $0x30] sm:$0xff]
        %v282 = vld [vmem:[%s1 + $0x38] sm:$0xff]
        %v291 = vunpack.c.l.b16 %v275
        %v292 = vunpack.c.h.b16 %v275
        %v293 = vunpack.c.l.b16 %v276
        %v294 = vunpack.c.h.b16 %v276
        %v295 = vunpack.c.l.b16 %v277
        %v296 = vunpack.c.h.b16 %v277
        %v297 = vunpack.c.l.b16 %v278
        %v298 = vunpack.c.h.b16 %v278
        %v299 = vunpack.c.l.b16 %v279
        %v300 = vunpack.c.h.b16 %v279
        %v301 = vunpack.c.l.b16 %v280
        %v302 = vunpack.c.h.b16 %v280
        %v303 = vunpack.c.l.b16 %v281
        %v304 = vunpack.c.h.b16 %v281
        %v305 = vunpack.c.l.b16 %v282
        %v306 = vunpack.c.h.b16 %v282
        %v307 = vpack.c.b16 %v293, %v291
        %v308 = vpack.c.b16 %v294, %v292
        %v309 = vpack.c.b16 %v297, %v295
        %v310 = vpack.c.b16 %v298, %v296
        %v311 = vpack.c.b16 %v301, %v299
        %v312 = vpack.c.b16 %v302, %v300
        %v313 = vpack.c.b16 %v305, %v303
        %v314 = vpack.c.b16 %v306, %v304
        %vm323 = vcmask 523264
        %v325 = vsel %vm323, %v259, 0
        %v328 = vsel %vm323, %v260, 0
        %v331 = vsel %vm323, %v261, 0
        %v334 = vsel %vm323, %v262, 0
        %v337 = vsel %vm323, %v263, 0
        %v340 = vsel %vm323, %v264, 0
        %v343 = vsel %vm323, %v265, 0
        %v346 = vsel %vm323, %v266, 0
        %v349 = vsel %vm323, %v267, 0
        %v352 = vsel %vm323, %v268, 0
        %v355 = vsel %vm323, %v269, 0
        %v358 = vsel %vm323, %v270, 0
        %v361 = vsel %vm323, %v271, 0
        %v364 = vsel %vm323, %v272, 0
        %v367 = vsel %vm323, %v273, 0
        %v370 = vsel %vm323, %v274, 0
        %372 = vmatprep.subr.bf16.mxu0 0
        %373 = vmatpush1.bf16.msra.mxu0 0
        %374 = vmatprep.subr.bf16.mxu0 0
        %375 = vmatpush1.bf16.msra.mxu0 0
        %376 = vmatprep.subr.bf16.mxu0 0
        %377 = vmatpush1.bf16.msra.mxu0 0
        %378 = vmatprep.subr.bf16.mxu0 0
        %379 = vmatpush1.bf16.msra.mxu0 0
        %380 = vmatprep.subr.bf16.mxu0 %v314
        %381 = vmatpush1.bf16.msra.mxu0 %v313
        %382 = vmatprep.subr.bf16.mxu0 %v312
        %383 = vmatpush1.bf16.msra.mxu0 %v311
        %384 = vmatprep.subr.bf16.mxu0 %v310
        %385 = vmatpush1.bf16.msra.mxu0 %v309
        %386 = vmatprep.subr.bf16.mxu0 %v308
        %387 = vmatpush1.bf16.msra.mxu0 %v307
        %388 = vmatprep.subr.bf16.mxu0 0
        %389 = vmatpush2.bf16.msra.mxu0 0
        %390 = vmatprep.subr.bf16.mxu0 0
        %391 = vmatpush2.bf16.msra.mxu0 0
        %392 = vmatprep.subr.bf16.mxu0 0
        %393 = vmatpush2.bf16.msra.mxu0 0
        %394 = vmatprep.subr.bf16.mxu0 0
        %395 = vmatpush2.bf16.msra.mxu0 0
        %396 = vmatprep.subr.bf16.mxu0 0
        %397 = vmatpush2.bf16.msra.mxu0 0
        %398 = vmatprep.subr.bf16.mxu0 0
        %399 = vmatpush2.bf16.msra.mxu0 0
        %400 = vmatprep.subr.bf16.mxu0 0
        %401 = vmatpush2.bf16.msra.mxu0 0
        %402 = vmatprep.subr.bf16.mxu0 0
        %403 = vmatpush2.bf16.msra.mxu0 0
        %404 = vmatprep.mubr.bf16.mxu0 0
        %405 = vmatmul.mubr.bf16.gmra.mxu0 %v325
        %v406 = vpop.f32.mrf.mxu0
        %v407 = vadd.f32 0.0, %v406
        %v408 = vpop.f32.mrf.mxu0
        %v409 = vadd.f32 0.0, %v408
        %v410 = vpop.f32.mrf.mxu0
        %v411 = vadd.f32 0.0, %v410
        %v412 = vpop.f32.mrf.mxu0
        %v413 = vadd.f32 0.0, %v412
        %414 = vmatprep.mubr.bf16.mxu0 0
        %415 = vmatmul.mubr.bf16.gmra.mxu0 %v328
        %v416 = vpop.f32.mrf.mxu0
        %v417 = vadd.f32 0.0, %v416
        %v418 = vpop.f32.mrf.mxu0
        %v419 = vadd.f32 0.0, %v418
        %v420 = vpop.f32.mrf.mxu0
        %v421 = vadd.f32 0.0, %v420
        %v422 = vpop.f32.mrf.mxu0
        %v423 = vadd.f32 0.0, %v422
        %424 = vmatprep.mubr.bf16.mxu0 0
        %425 = vmatmul.mubr.bf16.gmra.mxu0 %v331
        %v426 = vpop.f32.mrf.mxu0
        %v427 = vadd.f32 0.0, %v426
        %v428 = vpop.f32.mrf.mxu0
        %v429 = vadd.f32 0.0, %v428
        %v430 = vpop.f32.mrf.mxu0
        %v431 = vadd.f32 0.0, %v430
        %v432 = vpop.f32.mrf.mxu0
        %v433 = vadd.f32 0.0, %v432
        %434 = vmatprep.mubr.bf16.mxu0 0
        %435 = vmatmul.mubr.bf16.gmra.mxu0 %v334
        %v436 = vpop.f32.mrf.mxu0
        %v437 = vadd.f32 0.0, %v436
        %v438 = vpop.f32.mrf.mxu0
        %v439 = vadd.f32 0.0, %v438
        %v440 = vpop.f32.mrf.mxu0
        %v441 = vadd.f32 0.0, %v440
        %v442 = vpop.f32.mrf.mxu0
        %v443 = vadd.f32 0.0, %v442
        %444 = vmatprep.mubr.bf16.mxu0 0
        %445 = vmatmul.mubr.bf16.gmra.mxu0 %v337
        %v446 = vpop.f32.mrf.mxu0
        %v447 = vadd.f32 0.0, %v446
        %v448 = vpop.f32.mrf.mxu0
        %v449 = vadd.f32 0.0, %v448
        %v450 = vpop.f32.mrf.mxu0
        %v451 = vadd.f32 0.0, %v450
        %v452 = vpop.f32.mrf.mxu0
        %v453 = vadd.f32 0.0, %v452
        %454 = vmatprep.mubr.bf16.mxu0 0
        %455 = vmatmul.mubr.bf16.gmra.mxu0 %v340
        %v456 = vpop.f32.mrf.mxu0
        %v457 = vadd.f32 0.0, %v456
        %v458 = vpop.f32.mrf.mxu0
        %v459 = vadd.f32 0.0, %v458
        %v460 = vpop.f32.mrf.mxu0
        %v461 = vadd.f32 0.0, %v460
        %v462 = vpop.f32.mrf.mxu0
        %v463 = vadd.f32 0.0, %v462
        %464 = vmatprep.mubr.bf16.mxu0 0
        %465 = vmatmul.mubr.bf16.gmra.mxu0 %v343
        %v466 = vpop.f32.mrf.mxu0
        %v467 = vadd.f32 0.0, %v466
        %v468 = vpop.f32.mrf.mxu0
        %v469 = vadd.f32 0.0, %v468
        %v470 = vpop.f32.mrf.mxu0
        %v471 = vadd.f32 0.0, %v470
        %v472 = vpop.f32.mrf.mxu0
        %v473 = vadd.f32 0.0, %v472
        %474 = vmatprep.mubr.bf16.mxu0 0
        %475 = vmatmul.mubr.bf16.gmra.mxu0 %v346
        %v476 = vpop.f32.mrf.mxu0
        %v477 = vadd.f32 0.0, %v476
        %v478 = vpop.f32.mrf.mxu0
        %v479 = vadd.f32 0.0, %v478
        %v480 = vpop.f32.mrf.mxu0
        %v481 = vadd.f32 0.0, %v480
        %v482 = vpop.f32.mrf.mxu0
        %v483 = vadd.f32 0.0, %v482
        %484 = vmatprep.mubr.bf16.mxu0 0
        %485 = vmatmul.mubr.bf16.gmra.mxu0 %v349
        %v486 = vpop.f32.mrf.mxu0
        %v487 = vadd.f32 0.0, %v486
        %v488 = vpop.f32.mrf.mxu0
        %v489 = vadd.f32 0.0, %v488
        %v490 = vpop.f32.mrf.mxu0
        %v491 = vadd.f32 0.0, %v490
        %v492 = vpop.f32.mrf.mxu0
        %v493 = vadd.f32 0.0, %v492
        %494 = vmatprep.mubr.bf16.mxu0 0
        %495 = vmatmul.mubr.bf16.gmra.mxu0 %v352
        %v496 = vpop.f32.mrf.mxu0
        %v497 = vadd.f32 0.0, %v496
        %v498 = vpop.f32.mrf.mxu0
        %v499 = vadd.f32 0.0, %v498
        %v500 = vpop.f32.mrf.mxu0
        %v501 = vadd.f32 0.0, %v500
        %v502 = vpop.f32.mrf.mxu0
        %v503 = vadd.f32 0.0, %v502
        %504 = vmatprep.mubr.bf16.mxu0 0
        %505 = vmatmul.mubr.bf16.gmra.mxu0 %v355
        %v506 = vpop.f32.mrf.mxu0
        %v507 = vadd.f32 0.0, %v506
        %v508 = vpop.f32.mrf.mxu0
        %v509 = vadd.f32 0.0, %v508
        %v510 = vpop.f32.mrf.mxu0
        %v511 = vadd.f32 0.0, %v510
        %v512 = vpop.f32.mrf.mxu0
        %v513 = vadd.f32 0.0, %v512
        %514 = vmatprep.mubr.bf16.mxu0 0
        %515 = vmatmul.mubr.bf16.gmra.mxu0 %v358
        %v516 = vpop.f32.mrf.mxu0
        %v517 = vadd.f32 0.0, %v516
        %v518 = vpop.f32.mrf.mxu0
        %v519 = vadd.f32 0.0, %v518
        %v520 = vpop.f32.mrf.mxu0
        %v521 = vadd.f32 0.0, %v520
        %v522 = vpop.f32.mrf.mxu0
        %v523 = vadd.f32 0.0, %v522
        %524 = vmatprep.mubr.bf16.mxu0 0
        %525 = vmatmul.mubr.bf16.gmra.mxu0 %v361
        %v526 = vpop.f32.mrf.mxu0
        %v527 = vadd.f32 0.0, %v526
        %v528 = vpop.f32.mrf.mxu0
        %v529 = vadd.f32 0.0, %v528
        %v530 = vpop.f32.mrf.mxu0
        %v531 = vadd.f32 0.0, %v530
        %v532 = vpop.f32.mrf.mxu0
        %v533 = vadd.f32 0.0, %v532
        %534 = vmatprep.mubr.bf16.mxu0 0
        %535 = vmatmul.mubr.bf16.gmra.mxu0 %v364
        %v536 = vpop.f32.mrf.mxu0
        %v537 = vadd.f32 0.0, %v536
        %v538 = vpop.f32.mrf.mxu0
        %v539 = vadd.f32 0.0, %v538
        %v540 = vpop.f32.mrf.mxu0
        %v541 = vadd.f32 0.0, %v540
        %v542 = vpop.f32.mrf.mxu0
        %v543 = vadd.f32 0.0, %v542
        %544 = vmatprep.mubr.bf16.mxu0 0
        %545 = vmatmul.mubr.bf16.gmra.mxu0 %v367
        %v546 = vpop.f32.mrf.mxu0
        %v547 = vadd.f32 0.0, %v546
        %v548 = vpop.f32.mrf.mxu0
        %v549 = vadd.f32 0.0, %v548
        %v550 = vpop.f32.mrf.mxu0
        %v551 = vadd.f32 0.0, %v550
        %v552 = vpop.f32.mrf.mxu0
        %v553 = vadd.f32 0.0, %v552
        %554 = vmatprep.mubr.bf16.mxu0 0
        %555 = vmatmul.mubr.bf16.gmra.mxu0 %v370
        %v556 = vpop.f32.mrf.mxu0
        %v557 = vadd.f32 0.0, %v556
        %v558 = vpop.f32.mrf.mxu0
        %v559 = vadd.f32 0.0, %v558
        %v560 = vpop.f32.mrf.mxu0
        %v561 = vadd.f32 0.0, %v560
        %v562 = vpop.f32.mrf.mxu0
        %v563 = vadd.f32 0.0, %v562
        %564 = vdwg.mxu0
        %v565 = vld [vmem:[%s2] sm:$0x1]
        %v567 = vlaneseq
        %v568 = vshrl.u32 %v567, 7
        %v569 = vsub.s32 0, %v568
        %v570 = vrot.slane %v565, %v569
        %v572 = vadd.f32 %v407, %v570
        %v573 = vadd.f32 %v411, %v570
        %v574 = vadd.f32 %v417, %v570
        %v575 = vadd.f32 %v421, %v570
        %v576 = vadd.f32 %v427, %v570
        %v577 = vadd.f32 %v431, %v570
        %v578 = vadd.f32 %v437, %v570
        %v579 = vadd.f32 %v441, %v570
        %v580 = vadd.f32 %v447, %v570
        %v581 = vadd.f32 %v451, %v570
        %v582 = vadd.f32 %v457, %v570
        %v583 = vadd.f32 %v461, %v570
        %v584 = vadd.f32 %v467, %v570
        %v585 = vadd.f32 %v471, %v570
        %v586 = vadd.f32 %v477, %v570
        %v587 = vadd.f32 %v481, %v570
        %v588 = vadd.f32 %v487, %v570
        %v589 = vadd.f32 %v491, %v570
        %v590 = vadd.f32 %v497, %v570
        %v591 = vadd.f32 %v501, %v570
        %v592 = vadd.f32 %v507, %v570
        %v593 = vadd.f32 %v511, %v570
        %v594 = vadd.f32 %v517, %v570
        %v595 = vadd.f32 %v521, %v570
        %v596 = vadd.f32 %v527, %v570
        %v597 = vadd.f32 %v531, %v570
        %v598 = vadd.f32 %v537, %v570
        %v599 = vadd.f32 %v541, %v570
        %v600 = vadd.f32 %v547, %v570
        %v601 = vadd.f32 %v551, %v570
        %v602 = vadd.f32 %v557, %v570
        %v603 = vadd.f32 %v561, %v570
        %v604 = vld [vmem:[%s3] sm:$0x1]
        %v605 = vld [vmem:[%s4] sm:$0x1]
        %606 = vadd.xlane.f32.xlu0 %v572
        %v607 = vpop.xlane.xlu0 %606
        %608 = vadd.xlane.f32.xlu0 %v573
        %v609 = vpop.xlane.xlu0 %608
        %610 = vadd.xlane.f32.xlu0 %v574
        %v611 = vpop.xlane.xlu0 %610
        %612 = vadd.xlane.f32.xlu0 %v575
        %v613 = vpop.xlane.xlu0 %612
        %614 = vadd.xlane.f32.xlu0 %v576
        %v615 = vpop.xlane.xlu0 %614
        %616 = vadd.xlane.f32.xlu0 %v577
        %v617 = vpop.xlane.xlu0 %616
        %618 = vadd.xlane.f32.xlu0 %v578
        %v619 = vpop.xlane.xlu0 %618
        %620 = vadd.xlane.f32.xlu0 %v579
        %v621 = vpop.xlane.xlu0 %620
        %622 = vadd.xlane.f32.xlu0 %v580
        %v623 = vpop.xlane.xlu0 %622
        %624 = vadd.xlane.f32.xlu0 %v581
        %v625 = vpop.xlane.xlu0 %624
        %626 = vadd.xlane.f32.xlu0 %v582
        %v627 = vpop.xlane.xlu0 %626
        %628 = vadd.xlane.f32.xlu0 %v583
        %v629 = vpop.xlane.xlu0 %628
        %630 = vadd.xlane.f32.xlu0 %v584
        %v631 = vpop.xlane.xlu0 %630
        %632 = vadd.xlane.f32.xlu0 %v585
        %v633 = vpop.xlane.xlu0 %632
        %634 = vadd.xlane.f32.xlu0 %v586
        %v635 = vpop.xlane.xlu0 %634
        %636 = vadd.xlane.f32.xlu0 %v587
        %v637 = vpop.xlane.xlu0 %636
        %638 = vadd.xlane.f32.xlu0 %v588
        %v639 = vpop.xlane.xlu0 %638
        %640 = vadd.xlane.f32.xlu0 %v589
        %v641 = vpop.xlane.xlu0 %640
        %642 = vadd.xlane.f32.xlu0 %v590
        %v643 = vpop.xlane.xlu0 %642
        %644 = vadd.xlane.f32.xlu0 %v591
        %v645 = vpop.xlane.xlu0 %644
        %646 = vadd.xlane.f32.xlu0 %v592
        %v647 = vpop.xlane.xlu0 %646
        %648 = vadd.xlane.f32.xlu0 %v593
        %v649 = vpop.xlane.xlu0 %648
        %650 = vadd.xlane.f32.xlu0 %v594
        %v651 = vpop.xlane.xlu0 %650
        %652 = vadd.xlane.f32.xlu0 %v595
        %v653 = vpop.xlane.xlu0 %652
        %654 = vadd.xlane.f32.xlu0 %v596
        %v655 = vpop.xlane.xlu0 %654
        %656 = vadd.xlane.f32.xlu0 %v597
        %v657 = vpop.xlane.xlu0 %656
        %658 = vadd.xlane.f32.xlu0 %v598
        %v659 = vpop.xlane.xlu0 %658
        %660 = vadd.xlane.f32.xlu0 %v599
        %v661 = vpop.xlane.xlu0 %660
        %662 = vadd.xlane.f32.xlu0 %v600
        %v663 = vpop.xlane.xlu0 %662
        %664 = vadd.xlane.f32.xlu0 %v601
        %v665 = vpop.xlane.xlu0 %664
        %666 = vadd.xlane.f32.xlu0 %v602
        %v667 = vpop.xlane.xlu0 %666
        %668 = vadd.xlane.f32.xlu0 %v603
        %v669 = vpop.xlane.xlu0 %668
        %v670 = vrcp.pop 128.0
        %v671 = vmul.f32 %v607, %v670
        %v672 = vmul.f32 %v609, %v670
        %v673 = vmul.f32 %v611, %v670
        %v674 = vmul.f32 %v613, %v670
        %v675 = vmul.f32 %v615, %v670
        %v676 = vmul.f32 %v617, %v670
        %v677 = vmul.f32 %v619, %v670
        %v678 = vmul.f32 %v621, %v670
        %v679 = vmul.f32 %v623, %v670
        %v680 = vmul.f32 %v625, %v670
        %v681 = vmul.f32 %v627, %v670
        %v682 = vmul.f32 %v629, %v670
        %v683 = vmul.f32 %v631, %v670
        %v684 = vmul.f32 %v633, %v670
        %v685 = vmul.f32 %v635, %v670
        %v686 = vmul.f32 %v637, %v670
        %v687 = vmul.f32 %v639, %v670
        %v688 = vmul.f32 %v641, %v670
        %v689 = vmul.f32 %v643, %v670
        %v690 = vmul.f32 %v645, %v670
        %v691 = vmul.f32 %v647, %v670
        %v692 = vmul.f32 %v649, %v670
        %v693 = vmul.f32 %v651, %v670
        %v694 = vmul.f32 %v653, %v670
        %v695 = vmul.f32 %v655, %v670
        %v696 = vmul.f32 %v657, %v670
        %v697 = vmul.f32 %v659, %v670
        %v698 = vmul.f32 %v661, %v670
        %v699 = vmul.f32 %v663, %v670
        %v700 = vmul.f32 %v665, %v670
        %v701 = vmul.f32 %v667, %v670
        %v702 = vmul.f32 %v669, %v670
        %v703 = vsub.f32 %v572, %v671
        %v704 = vsub.f32 %v573, %v672
        %v705 = vsub.f32 %v574, %v673
        %v706 = vsub.f32 %v575, %v674
        %v707 = vsub.f32 %v576, %v675
        %v708 = vsub.f32 %v577, %v676
        %v709 = vsub.f32 %v578, %v677
        %v710 = vsub.f32 %v579, %v678
        %v711 = vsub.f32 %v580, %v679
        %v712 = vsub.f32 %v581, %v680
        %v713 = vsub.f32 %v582, %v681
        %v714 = vsub.f32 %v583, %v682
        %v715 = vsub.f32 %v584, %v683
        %v716 = vsub.f32 %v585, %v684
        %v717 = vsub.f32 %v586, %v685
        %v718 = vsub.f32 %v587, %v686
        %v719 = vsub.f32 %v588, %v687
        %v720 = vsub.f32 %v589, %v688
        %v721 = vsub.f32 %v590, %v689
        %v722 = vsub.f32 %v591, %v690
        %v723 = vsub.f32 %v592, %v691
        %v724 = vsub.f32 %v593, %v692
        %v725 = vsub.f32 %v594, %v693
        %v726 = vsub.f32 %v595, %v694
        %v727 = vsub.f32 %v596, %v695
        %v728 = vsub.f32 %v597, %v696
        %v729 = vsub.f32 %v598, %v697
        %v730 = vsub.f32 %v599, %v698
        %v731 = vsub.f32 %v600, %v699
        %v732 = vsub.f32 %v601, %v700
        %v733 = vsub.f32 %v602, %v701
        %v734 = vsub.f32 %v603, %v702
        %v735 = vmul.f32 %v703, %v703
        %v736 = vmul.f32 %v704, %v704
        %v737 = vmul.f32 %v705, %v705
        %v738 = vmul.f32 %v706, %v706
        %v739 = vmul.f32 %v707, %v707
        %v740 = vmul.f32 %v708, %v708
        %v741 = vmul.f32 %v709, %v709
        %v742 = vmul.f32 %v710, %v710
        %v743 = vmul.f32 %v711, %v711
        %v744 = vmul.f32 %v712, %v712
        %v745 = vmul.f32 %v713, %v713
        %v746 = vmul.f32 %v714, %v714
        %v747 = vmul.f32 %v715, %v715
        %v748 = vmul.f32 %v716, %v716
        %v749 = vmul.f32 %v717, %v717
        %v750 = vmul.f32 %v718, %v718
        %v751 = vmul.f32 %v719, %v719
        %v752 = vmul.f32 %v720, %v720
        %v753 = vmul.f32 %v721, %v721
        %v754 = vmul.f32 %v722, %v722
        %v755 = vmul.f32 %v723, %v723
        %v756 = vmul.f32 %v724, %v724
        %v757 = vmul.f32 %v725, %v725
        %v758 = vmul.f32 %v726, %v726
        %v759 = vmul.f32 %v727, %v727
        %v760 = vmul.f32 %v728, %v728
        %v761 = vmul.f32 %v729, %v729
        %v762 = vmul.f32 %v730, %v730
        %v763 = vmul.f32 %v731, %v731
        %v764 = vmul.f32 %v732, %v732
        %v765 = vmul.f32 %v733, %v733
        %v766 = vmul.f32 %v734, %v734
        %767 = vadd.xlane.f32.xlu0 %v735
        %v768 = vpop.xlane.xlu0 %767
        %769 = vadd.xlane.f32.xlu0 %v736
        %v770 = vpop.xlane.xlu0 %769
        %771 = vadd.xlane.f32.xlu0 %v737
        %v772 = vpop.xlane.xlu0 %771
        %773 = vadd.xlane.f32.xlu0 %v738
        %v774 = vpop.xlane.xlu0 %773
        %775 = vadd.xlane.f32.xlu0 %v739
        %v776 = vpop.xlane.xlu0 %775
        %777 = vadd.xlane.f32.xlu0 %v740
        %v778 = vpop.xlane.xlu0 %777
        %779 = vadd.xlane.f32.xlu0 %v741
        %v780 = vpop.xlane.xlu0 %779
        %781 = vadd.xlane.f32.xlu0 %v742
        %v782 = vpop.xlane.xlu0 %781
        %783 = vadd.xlane.f32.xlu0 %v743
        %v784 = vpop.xlane.xlu0 %783
        %785 = vadd.xlane.f32.xlu0 %v744
        %v786 = vpop.xlane.xlu0 %785
        %787 = vadd.xlane.f32.xlu0 %v745
        %v788 = vpop.xlane.xlu0 %787
        %789 = vadd.xlane.f32.xlu0 %v746
        %v790 = vpop.xlane.xlu0 %789
        %791 = vadd.xlane.f32.xlu0 %v747
        %v792 = vpop.xlane.xlu0 %791
        %793 = vadd.xlane.f32.xlu0 %v748
        %v794 = vpop.xlane.xlu0 %793
        %795 = vadd.xlane.f32.xlu0 %v749
        %v796 = vpop.xlane.xlu0 %795
        %797 = vadd.xlane.f32.xlu0 %v750
        %v798 = vpop.xlane.xlu0 %797
        %799 = vadd.xlane.f32.xlu0 %v751
        %v800 = vpop.xlane.xlu0 %799
        %801 = vadd.xlane.f32.xlu0 %v752
        %v802 = vpop.xlane.xlu0 %801
        %803 = vadd.xlane.f32.xlu0 %v753
        %v804 = vpop.xlane.xlu0 %803
        %805 = vadd.xlane.f32.xlu0 %v754
        %v806 = vpop.xlane.xlu0 %805
        %807 = vadd.xlane.f32.xlu0 %v755
        %v808 = vpop.xlane.xlu0 %807
        %809 = vadd.xlane.f32.xlu0 %v756
        %v810 = vpop.xlane.xlu0 %809
        %811 = vadd.xlane.f32.xlu0 %v757
        %v812 = vpop.xlane.xlu0 %811
        %813 = vadd.xlane.f32.xlu0 %v758
        %v814 = vpop.xlane.xlu0 %813
        %815 = vadd.xlane.f32.xlu0 %v759
        %v816 = vpop.xlane.xlu0 %815
        %817 = vadd.xlane.f32.xlu0 %v760
        %v818 = vpop.xlane.xlu0 %817
        %819 = vadd.xlane.f32.xlu0 %v761
        %v820 = vpop.xlane.xlu0 %819
        %821 = vadd.xlane.f32.xlu0 %v762
        %v822 = vpop.xlane.xlu0 %821
        %823 = vadd.xlane.f32.xlu0 %v763
        %v824 = vpop.xlane.xlu0 %823
        %825 = vadd.xlane.f32.xlu0 %v764
        %v826 = vpop.xlane.xlu0 %825
        %827 = vadd.xlane.f32.xlu0 %v765
        %v828 = vpop.xlane.xlu0 %827
        %829 = vadd.xlane.f32.xlu0 %v766
        %v830 = vpop.xlane.xlu0 %829
        %v831 = vmul.f32 %v768, %v670
        %v832 = vmul.f32 %v770, %v670
        %v833 = vmul.f32 %v772, %v670
        %v834 = vmul.f32 %v774, %v670
        %v835 = vmul.f32 %v776, %v670
        %v836 = vmul.f32 %v778, %v670
        %v837 = vmul.f32 %v780, %v670
        %v838 = vmul.f32 %v782, %v670
        %v839 = vmul.f32 %v784, %v670
        %v840 = vmul.f32 %v786, %v670
        %v841 = vmul.f32 %v788, %v670
        %v842 = vmul.f32 %v790, %v670
        %v843 = vmul.f32 %v792, %v670
        %v844 = vmul.f32 %v794, %v670
        %v845 = vmul.f32 %v796, %v670
        %v846 = vmul.f32 %v798, %v670
        %v847 = vmul.f32 %v800, %v670
        %v848 = vmul.f32 %v802, %v670
        %v849 = vmul.f32 %v804, %v670
        %v850 = vmul.f32 %v806, %v670
        %v851 = vmul.f32 %v808, %v670
        %v852 = vmul.f32 %v810, %v670
        %v853 = vmul.f32 %v812, %v670
        %v854 = vmul.f32 %v814, %v670
        %v855 = vmul.f32 %v816, %v670
        %v856 = vmul.f32 %v818, %v670
        %v857 = vmul.f32 %v820, %v670
        %v858 = vmul.f32 %v822, %v670
        %v859 = vmul.f32 %v824, %v670
        %v860 = vmul.f32 %v826, %v670
        %v861 = vmul.f32 %v828, %v670
        %v862 = vmul.f32 %v830, %v670
        %v863 = vadd.f32 %v831, 1e-05
        %v864 = vadd.f32 %v832, 1e-05
        %v865 = vadd.f32 %v833, 1e-05
        %v866 = vadd.f32 %v834, 1e-05
        %v867 = vadd.f32 %v835, 1e-05
        %v868 = vadd.f32 %v836, 1e-05
        %v869 = vadd.f32 %v837, 1e-05
        %v870 = vadd.f32 %v838, 1e-05
        %v871 = vadd.f32 %v839, 1e-05
        %v872 = vadd.f32 %v840, 1e-05
        %v873 = vadd.f32 %v841, 1e-05
        %v874 = vadd.f32 %v842, 1e-05
        %v875 = vadd.f32 %v843, 1e-05
        %v876 = vadd.f32 %v844, 1e-05
        %v877 = vadd.f32 %v845, 1e-05
        %v878 = vadd.f32 %v846, 1e-05
        %v879 = vadd.f32 %v847, 1e-05
        %v880 = vadd.f32 %v848, 1e-05
        %v881 = vadd.f32 %v849, 1e-05
        %v882 = vadd.f32 %v850, 1e-05
        %v883 = vadd.f32 %v851, 1e-05
        %v884 = vadd.f32 %v852, 1e-05
        %v885 = vadd.f32 %v853, 1e-05
        %v886 = vadd.f32 %v854, 1e-05
        %v887 = vadd.f32 %v855, 1e-05
        %v888 = vadd.f32 %v856, 1e-05
        %v889 = vadd.f32 %v857, 1e-05
        %v890 = vadd.f32 %v858, 1e-05
        %v891 = vadd.f32 %v859, 1e-05
        %v892 = vadd.f32 %v860, 1e-05
        %v893 = vadd.f32 %v861, 1e-05
        %v894 = vadd.f32 %v862, 1e-05
        %v895 = vrsqrt.pop %v863
        %v896 = vrsqrt.pop %v864
        %v897 = vrsqrt.pop %v865
        %v898 = vrsqrt.pop %v866
        %v899 = vrsqrt.pop %v867
        %v900 = vrsqrt.pop %v868
        %v901 = vrsqrt.pop %v869
        %v902 = vrsqrt.pop %v870
        %v903 = vrsqrt.pop %v871
        %v904 = vrsqrt.pop %v872
        %v905 = vrsqrt.pop %v873
        %v906 = vrsqrt.pop %v874
        %v907 = vrsqrt.pop %v875
        %v908 = vrsqrt.pop %v876
        %v909 = vrsqrt.pop %v877
        %v910 = vrsqrt.pop %v878
        %v911 = vrsqrt.pop %v879
        %v912 = vrsqrt.pop %v880
        %v913 = vrsqrt.pop %v881
        %v914 = vrsqrt.pop %v882
        %v915 = vrsqrt.pop %v883
        %v916 = vrsqrt.pop %v884
        %v917 = vrsqrt.pop %v885
        %v918 = vrsqrt.pop %v886
        %v919 = vrsqrt.pop %v887
        %v920 = vrsqrt.pop %v888
        %v921 = vrsqrt.pop %v889
        %v922 = vrsqrt.pop %v890
        %v923 = vrsqrt.pop %v891
        %v924 = vrsqrt.pop %v892
        %v925 = vrsqrt.pop %v893
        %v926 = vrsqrt.pop %v894
        %v927 = vmul.f32 %v703, %v895
        %v928 = vmul.f32 %v704, %v896
        %v929 = vmul.f32 %v705, %v897
        %v930 = vmul.f32 %v706, %v898
        %v931 = vmul.f32 %v707, %v899
        %v932 = vmul.f32 %v708, %v900
        %v933 = vmul.f32 %v709, %v901
        %v934 = vmul.f32 %v710, %v902
        %v935 = vmul.f32 %v711, %v903
        %v936 = vmul.f32 %v712, %v904
        %v937 = vmul.f32 %v713, %v905
        %v938 = vmul.f32 %v714, %v906
        %v939 = vmul.f32 %v715, %v907
        %v940 = vmul.f32 %v716, %v908
        %v941 = vmul.f32 %v717, %v909
        %v942 = vmul.f32 %v718, %v910
        %v943 = vmul.f32 %v719, %v911
        %v944 = vmul.f32 %v720, %v912
        %v945 = vmul.f32 %v721, %v913
        %v946 = vmul.f32 %v722, %v914
        %v947 = vmul.f32 %v723, %v915
        %v948 = vmul.f32 %v724, %v916
        %v949 = vmul.f32 %v725, %v917
        %v950 = vmul.f32 %v726, %v918
        %v951 = vmul.f32 %v727, %v919
        %v952 = vmul.f32 %v728, %v920
        %v953 = vmul.f32 %v729, %v921
        %v954 = vmul.f32 %v730, %v922
        %v955 = vmul.f32 %v731, %v923
        %v956 = vmul.f32 %v732, %v924
        %v957 = vmul.f32 %v733, %v925
        %v958 = vmul.f32 %v734, %v926
        %v960 = vlaneseq
        %v961 = vshrl.u32 %v960, 7
        %v962 = vsub.s32 0, %v961
        %v963 = vrot.slane %v604, %v962
        %v965 = vmul.f32 %v927, %v963
        %v966 = vmul.f32 %v928, %v963
        %v967 = vmul.f32 %v929, %v963
        %v968 = vmul.f32 %v930, %v963
        %v969 = vmul.f32 %v931, %v963
        %v970 = vmul.f32 %v932, %v963
        %v971 = vmul.f32 %v933, %v963
        %v972 = vmul.f32 %v934, %v963
        %v973 = vmul.f32 %v935, %v963
        %v974 = vmul.f32 %v936, %v963
        %v975 = vmul.f32 %v937, %v963
        %v976 = vmul.f32 %v938, %v963
        %v977 = vmul.f32 %v939, %v963
        %v978 = vmul.f32 %v940, %v963
        %v979 = vmul.f32 %v941, %v963
        %v980 = vmul.f32 %v942, %v963
        %v981 = vmul.f32 %v943, %v963
        %v982 = vmul.f32 %v944, %v963
        %v983 = vmul.f32 %v945, %v963
        %v984 = vmul.f32 %v946, %v963
        %v985 = vmul.f32 %v947, %v963
        %v986 = vmul.f32 %v948, %v963
        %v987 = vmul.f32 %v949, %v963
        %v988 = vmul.f32 %v950, %v963
        %v989 = vmul.f32 %v951, %v963
        %v990 = vmul.f32 %v952, %v963
        %v991 = vmul.f32 %v953, %v963
        %v992 = vmul.f32 %v954, %v963
        %v993 = vmul.f32 %v955, %v963
        %v994 = vmul.f32 %v956, %v963
        %v995 = vmul.f32 %v957, %v963
        %v996 = vmul.f32 %v958, %v963
        %v998 = vlaneseq
        %v999 = vshrl.u32 %v998, 7
        %v1000 = vsub.s32 0, %v999
        %v1001 = vrot.slane %v605, %v1000
        %v1003 = vadd.f32 %v965, %v1001
        %v1004 = vadd.f32 %v966, %v1001
        %v1005 = vadd.f32 %v967, %v1001
        %v1006 = vadd.f32 %v968, %v1001
        %v1007 = vadd.f32 %v969, %v1001
        %v1008 = vadd.f32 %v970, %v1001
        %v1009 = vadd.f32 %v971, %v1001
        %v1010 = vadd.f32 %v972, %v1001
        %v1011 = vadd.f32 %v973, %v1001
        %v1012 = vadd.f32 %v974, %v1001
        %v1013 = vadd.f32 %v975, %v1001
        %v1014 = vadd.f32 %v976, %v1001
        %v1015 = vadd.f32 %v977, %v1001
        %v1016 = vadd.f32 %v978, %v1001
        %v1017 = vadd.f32 %v979, %v1001
        %v1018 = vadd.f32 %v980, %v1001
        %v1019 = vadd.f32 %v981, %v1001
        %v1020 = vadd.f32 %v982, %v1001
        %v1021 = vadd.f32 %v983, %v1001
        %v1022 = vadd.f32 %v984, %v1001
        %v1023 = vadd.f32 %v985, %v1001
        %v1024 = vadd.f32 %v986, %v1001
        %v1025 = vadd.f32 %v987, %v1001
        %v1026 = vadd.f32 %v988, %v1001
        %v1027 = vadd.f32 %v989, %v1001
        %v1028 = vadd.f32 %v990, %v1001
        %v1029 = vadd.f32 %v991, %v1001
        %v1030 = vadd.f32 %v992, %v1001
        %v1031 = vadd.f32 %v993, %v1001
        %v1032 = vadd.f32 %v994, %v1001
        %v1033 = vadd.f32 %v995, %v1001
        %v1034 = vadd.f32 %v996, %v1001
        %v1035 = vadd.f32 %v1003, %v409
        %v1036 = vadd.f32 %v1004, %v413
        %v1037 = vadd.f32 %v1005, %v419
        %v1038 = vadd.f32 %v1006, %v423
        %v1039 = vadd.f32 %v1007, %v429
        %v1040 = vadd.f32 %v1008, %v433
        %v1041 = vadd.f32 %v1009, %v439
        %v1042 = vadd.f32 %v1010, %v443
        %v1043 = vadd.f32 %v1011, %v449
        %v1044 = vadd.f32 %v1012, %v453
        %v1045 = vadd.f32 %v1013, %v459
        %v1046 = vadd.f32 %v1014, %v463
        %v1047 = vadd.f32 %v1015, %v469
        %v1048 = vadd.f32 %v1016, %v473
        %v1049 = vadd.f32 %v1017, %v479
        %v1050 = vadd.f32 %v1018, %v483
        %v1051 = vadd.f32 %v1019, %v489
        %v1052 = vadd.f32 %v1020, %v493
        %v1053 = vadd.f32 %v1021, %v499
        %v1054 = vadd.f32 %v1022, %v503
        %v1055 = vadd.f32 %v1023, %v509
        %v1056 = vadd.f32 %v1024, %v513
        %v1057 = vadd.f32 %v1025, %v519
        %v1058 = vadd.f32 %v1026, %v523
        %v1059 = vadd.f32 %v1027, %v529
        %v1060 = vadd.f32 %v1028, %v533
        %v1061 = vadd.f32 %v1029, %v539
        %v1062 = vadd.f32 %v1030, %v543
        %v1063 = vadd.f32 %v1031, %v549
        %v1064 = vadd.f32 %v1032, %v553
        %v1065 = vadd.f32 %v1033, %v559
        %v1066 = vadd.f32 %v1034, %v563
        %v1067 = vmul.f32 %v1035, 0.5
        %v1068 = vmul.f32 %v1036, 0.5
        %v1069 = vmul.f32 %v1037, 0.5
        %v1070 = vmul.f32 %v1038, 0.5
        %v1071 = vmul.f32 %v1039, 0.5
        %v1072 = vmul.f32 %v1040, 0.5
        %v1073 = vmul.f32 %v1041, 0.5
        %v1074 = vmul.f32 %v1042, 0.5
        %v1075 = vmul.f32 %v1043, 0.5
        %v1076 = vmul.f32 %v1044, 0.5
        %v1077 = vmul.f32 %v1045, 0.5
        %v1078 = vmul.f32 %v1046, 0.5
        %v1079 = vmul.f32 %v1047, 0.5
        %v1080 = vmul.f32 %v1048, 0.5
        %v1081 = vmul.f32 %v1049, 0.5
        %v1082 = vmul.f32 %v1050, 0.5
        %v1083 = vmul.f32 %v1051, 0.5
        %v1084 = vmul.f32 %v1052, 0.5
        %v1085 = vmul.f32 %v1053, 0.5
        %v1086 = vmul.f32 %v1054, 0.5
        %v1087 = vmul.f32 %v1055, 0.5
        %v1088 = vmul.f32 %v1056, 0.5
        %v1089 = vmul.f32 %v1057, 0.5
        %v1090 = vmul.f32 %v1058, 0.5
        %v1091 = vmul.f32 %v1059, 0.5
        %v1092 = vmul.f32 %v1060, 0.5
        %v1093 = vmul.f32 %v1061, 0.5
        %v1094 = vmul.f32 %v1062, 0.5
        %v1095 = vmul.f32 %v1063, 0.5
        %v1096 = vmul.f32 %v1064, 0.5
        %v1097 = vmul.f32 %v1065, 0.5
        %v1098 = vmul.f32 %v1066, 0.5
        %v1099 = vtanh.pop %v1067
        %v1100 = vtanh.pop %v1068
        %v1101 = vtanh.pop %v1069
        %v1102 = vtanh.pop %v1070
        %v1103 = vtanh.pop %v1071
        %v1104 = vtanh.pop %v1072
        %v1105 = vtanh.pop %v1073
        %v1106 = vtanh.pop %v1074
        %v1107 = vtanh.pop %v1075
        %v1108 = vtanh.pop %v1076
        %v1109 = vtanh.pop %v1077
        %v1110 = vtanh.pop %v1078
        %v1111 = vtanh.pop %v1079
        %v1112 = vtanh.pop %v1080
        %v1113 = vtanh.pop %v1081
        %v1114 = vtanh.pop %v1082
        %v1115 = vtanh.pop %v1083
        %v1116 = vtanh.pop %v1084
        %v1117 = vtanh.pop %v1085
        %v1118 = vtanh.pop %v1086
        %v1119 = vtanh.pop %v1087
        %v1120 = vtanh.pop %v1088
        %v1121 = vtanh.pop %v1089
        %v1122 = vtanh.pop %v1090
        %v1123 = vtanh.pop %v1091
        %v1124 = vtanh.pop %v1092
        %v1125 = vtanh.pop %v1093
        %v1126 = vtanh.pop %v1094
        %v1127 = vtanh.pop %v1095
        %v1128 = vtanh.pop %v1096
        %v1129 = vtanh.pop %v1097
        %v1130 = vtanh.pop %v1098
        %v1131 = vmul.f32 %v1099, 0.5
        %v1132 = vmul.f32 %v1100, 0.5
        %v1133 = vmul.f32 %v1101, 0.5
        %v1134 = vmul.f32 %v1102, 0.5
        %v1135 = vmul.f32 %v1103, 0.5
        %v1136 = vmul.f32 %v1104, 0.5
        %v1137 = vmul.f32 %v1105, 0.5
        %v1138 = vmul.f32 %v1106, 0.5
        %v1139 = vmul.f32 %v1107, 0.5
        %v1140 = vmul.f32 %v1108, 0.5
        %v1141 = vmul.f32 %v1109, 0.5
        %v1142 = vmul.f32 %v1110, 0.5
        %v1143 = vmul.f32 %v1111, 0.5
        %v1144 = vmul.f32 %v1112, 0.5
        %v1145 = vmul.f32 %v1113, 0.5
        %v1146 = vmul.f32 %v1114, 0.5
        %v1147 = vmul.f32 %v1115, 0.5
        %v1148 = vmul.f32 %v1116, 0.5
        %v1149 = vmul.f32 %v1117, 0.5
        %v1150 = vmul.f32 %v1118, 0.5
        %v1151 = vmul.f32 %v1119, 0.5
        %v1152 = vmul.f32 %v1120, 0.5
        %v1153 = vmul.f32 %v1121, 0.5
        %v1154 = vmul.f32 %v1122, 0.5
        %v1155 = vmul.f32 %v1123, 0.5
        %v1156 = vmul.f32 %v1124, 0.5
        %v1157 = vmul.f32 %v1125, 0.5
        %v1158 = vmul.f32 %v1126, 0.5
        %v1159 = vmul.f32 %v1127, 0.5
        %v1160 = vmul.f32 %v1128, 0.5
        %v1161 = vmul.f32 %v1129, 0.5
        %v1162 = vmul.f32 %v1130, 0.5
        %v1163 = vadd.f32 %v1131, 0.5
        %v1164 = vadd.f32 %v1132, 0.5
        %v1165 = vadd.f32 %v1133, 0.5
        %v1166 = vadd.f32 %v1134, 0.5
        %v1167 = vadd.f32 %v1135, 0.5
        %v1168 = vadd.f32 %v1136, 0.5
        %v1169 = vadd.f32 %v1137, 0.5
        %v1170 = vadd.f32 %v1138, 0.5
        %v1171 = vadd.f32 %v1139, 0.5
        %v1172 = vadd.f32 %v1140, 0.5
        %v1173 = vadd.f32 %v1141, 0.5
        %v1174 = vadd.f32 %v1142, 0.5
        %v1175 = vadd.f32 %v1143, 0.5
        %v1176 = vadd.f32 %v1144, 0.5
        %v1177 = vadd.f32 %v1145, 0.5
        %v1178 = vadd.f32 %v1146, 0.5
        %v1179 = vadd.f32 %v1147, 0.5
        %v1180 = vadd.f32 %v1148, 0.5
        %v1181 = vadd.f32 %v1149, 0.5
        %v1182 = vadd.f32 %v1150, 0.5
        %v1183 = vadd.f32 %v1151, 0.5
        %v1184 = vadd.f32 %v1152, 0.5
        %v1185 = vadd.f32 %v1153, 0.5
        %v1186 = vadd.f32 %v1154, 0.5
        %v1187 = vadd.f32 %v1155, 0.5
        %v1188 = vadd.f32 %v1156, 0.5
        %v1189 = vadd.f32 %v1157, 0.5
        %v1190 = vadd.f32 %v1158, 0.5
        %v1191 = vadd.f32 %v1159, 0.5
        %v1192 = vadd.f32 %v1160, 0.5
        %v1193 = vadd.f32 %v1161, 0.5
        %v1194 = vadd.f32 %v1162, 0.5
        %v1195 = vmul.f32 %v1035, %v1163
        %v1196 = vmul.f32 %v1036, %v1164
        %v1197 = vmul.f32 %v1037, %v1165
        %v1198 = vmul.f32 %v1038, %v1166
        %v1199 = vmul.f32 %v1039, %v1167
        %v1200 = vmul.f32 %v1040, %v1168
        %v1201 = vmul.f32 %v1041, %v1169
        %v1202 = vmul.f32 %v1042, %v1170
        %v1203 = vmul.f32 %v1043, %v1171
        %v1204 = vmul.f32 %v1044, %v1172
        %v1205 = vmul.f32 %v1045, %v1173
        %v1206 = vmul.f32 %v1046, %v1174
        %v1207 = vmul.f32 %v1047, %v1175
        %v1208 = vmul.f32 %v1048, %v1176
        %v1209 = vmul.f32 %v1049, %v1177
        %v1210 = vmul.f32 %v1050, %v1178
        %v1211 = vmul.f32 %v1051, %v1179
        %v1212 = vmul.f32 %v1052, %v1180
        %v1213 = vmul.f32 %v1053, %v1181
        %v1214 = vmul.f32 %v1054, %v1182
        %v1215 = vmul.f32 %v1055, %v1183
        %v1216 = vmul.f32 %v1056, %v1184
        %v1217 = vmul.f32 %v1057, %v1185
        %v1218 = vmul.f32 %v1058, %v1186
        %v1219 = vmul.f32 %v1059, %v1187
        %v1220 = vmul.f32 %v1060, %v1188
        %v1221 = vmul.f32 %v1061, %v1189
        %v1222 = vmul.f32 %v1062, %v1190
        %v1223 = vmul.f32 %v1063, %v1191
        %v1224 = vmul.f32 %v1064, %v1192
        %v1225 = vmul.f32 %v1065, %v1193
        %v1226 = vmul.f32 %v1066, %v1194
        %1227 = vst [vmem:[%s218] sm:$0xff] %v1195
        %1228 = vst [vmem:[%s218 + $0x8] sm:$0xff] %v1196
        %1229 = vst [vmem:[%s218 + $0x10] sm:$0xff] %v1197
        %1230 = vst [vmem:[%s218 + $0x18] sm:$0xff] %v1198
        %1231 = vst [vmem:[%s218 + $0x20] sm:$0xff] %v1199
        %1232 = vst [vmem:[%s218 + $0x28] sm:$0xff] %v1200
        %1233 = vst [vmem:[%s218 + $0x30] sm:$0xff] %v1201
        %1234 = vst [vmem:[%s218 + $0x38] sm:$0xff] %v1202
        %1235 = vst [vmem:[%s218 + $0x40] sm:$0xff] %v1203
        %1236 = vst [vmem:[%s218 + $0x48] sm:$0xff] %v1204
        %1237 = vst [vmem:[%s218 + $0x50] sm:$0xff] %v1205
        %1238 = vst [vmem:[%s218 + $0x58] sm:$0xff] %v1206
        %1239 = vst [vmem:[%s218 + $0x60] sm:$0xff] %v1207
        %1240 = vst [vmem:[%s218 + $0x68] sm:$0xff] %v1208
        %1241 = vst [vmem:[%s218 + $0x70] sm:$0xff] %v1209
        %1242 = vst [vmem:[%s218 + $0x78] sm:$0xff] %v1210
        %1243 = vst [vmem:[%s218 + $0x80] sm:$0xff] %v1211
        %1244 = vst [vmem:[%s218 + $0x88] sm:$0xff] %v1212
        %1245 = vst [vmem:[%s218 + $0x90] sm:$0xff] %v1213
        %1246 = vst [vmem:[%s218 + $0x98] sm:$0xff] %v1214
        %1247 = vst [vmem:[%s218 + $0xa0] sm:$0xff] %v1215
        %1248 = vst [vmem:[%s218 + $0xa8] sm:$0xff] %v1216
        %1249 = vst [vmem:[%s218 + $0xb0] sm:$0xff] %v1217
        %1250 = vst [vmem:[%s218 + $0xb8] sm:$0xff] %v1218
        %1251 = vst [vmem:[%s218 + $0xc0] sm:$0xff] %v1219
        %1252 = vst [vmem:[%s218 + $0xc8] sm:$0xff] %v1220
        %1253 = vst [vmem:[%s218 + $0xd0] sm:$0xff] %v1221
        %1254 = vst [vmem:[%s218 + $0xd8] sm:$0xff] %v1222
        %1255 = vst [vmem:[%s218 + $0xe0] sm:$0xff] %v1223
        %1256 = vst [vmem:[%s218 + $0xe8] sm:$0xff] %v1224
        %1257 = vst [vmem:[%s218 + $0xf0] sm:$0xff] %v1225
        %1258 = vst [vmem:[%s218 + $0xf8] sm:$0xff] %v1226
        %s1259 = sand.u32 %s137, 1
        %s1260 = scalar_lea.sflag [#allocation3], %s1259
        %s1261 = sand.u32 %s137, 1
        %s1262 = smul.addr %s1261, 256
        %s1263 = scalar_lea.vmem [#allocation2], %s1262
        // Predicated region
        $region41: #{tpu_custom_call.1} parent=39 // pred_check
          %p1264 = pneg %p147
        $region42: #{tpu_custom_call.1} parent=39 // pred_check_branch
          %1266 = sbr.rel (%p1264) target = $region44
        $region43: #{tpu_custom_call.1} parent=39 // pred_region
          %s1267 = smul.u32 32, %s19
          %s1269 = ssub.s32 4096, 4096
          %1270 = vsyncadd %s1260, %s1269
          %s1271 = smul.addr %s1267, 128
          %s1272 = scalar_lea.hbm %s5, %s1271
          %s1273 = sshll.u32 %s1263, 4
          %s1274 = int_to_ptr.vmem [resolvable:$true] %s1273
          %1279 = dma.vmem_to_hbm [thread:$0]  %s1274, 4096, %s1272, %s1260, 128, 128, 8
        $region44: #{tpu_custom_call.1} parent=39 // pred_fallthru
          _
      $region40: #{tpu_custom_call.1} parent=5 // pred_fallthru
        _
      %p1280 = scmp.le.s32.totalorder 2, %s14
      // Predicated region
      $region45: #{tpu_custom_call.1} parent=5 // pred_check
        %p1281 = pneg %p1280
      $region46: #{tpu_custom_call.1} parent=5 // pred_check_branch
        %1283 = sbr.rel (%p1281) target = $region48
      $region47: #{tpu_custom_call.1} parent=5 // pred_region
        %s1284 = ssub.s32 %s14, 2
        // Predicated region
        $region49: #{tpu_custom_call.1} parent=47 // pred_check
          %p1285 = pneg %p153
        $region50: #{tpu_custom_call.1} parent=47 // pred_check_branch
          %1287 = sbr.rel (%p1285) target = $region52
        $region51: #{tpu_custom_call.1} parent=47 // pred_region
          %s1288 = sand.u32 %s138, 1
          %s1289 = scalar_lea.sflag [#allocation3], %s1288
          %s1290 = sand.u32 %s138, 1
          %s1291 = smul.addr %s1290, 256
          %s1292 = scalar_lea.vmem [#allocation2], %s1291
          %1293 = dma.done %s1289, 4096
        $region52: #{tpu_custom_call.1} parent=47 // pred_fallthru
          _
      $region48: #{tpu_custom_call.1} parent=5 // pred_fallthru
        _
    $region6: #{tpu_custom_call.1} parent=1 // loop_footer
      %s18 = sadd.s32 1, %s14
    $region7: #{tpu_custom_call.1} parent=1 // loop_footer_branch
      %13 = sbr.rel target = $region3
    $region8: #{tpu_custom_call.1} parent=1 // loop_exit
      _
    %1294 = vsyncpa [#allocation3], 1
    %s1295 = scalar_lea.sflag [#allocation3], 1
    %1296 = vsyncpa %s1295, 1

</llo_original>
